<compile_context>
chip_gen: v7x
topology: tpu7x:2x2x1
jax: 0.10.0
libtpu: 0.0.40
codegen_flags: <defaults>
</compile_context>

<pallas_src>
import jax
import jax.numpy as jnp
from jax import lax
from jax.experimental import pallas as pl
from jax.experimental.pallas import tpu as pltpu


def snl_kernel(xt_ref, att_ref, g_ref, w11s_ref, w2s_ref, bias_ref, o_ref):
    # xt_ref  : (1, Cin, TQ)   f32          query-tile slice of x (residual / x1 input)
    # att_ref : (1, TQ, HW)    f32 or bf16  query-row tile of the attention matrix
    # g_ref   : (1, HW, P)     bf16         precomputed g = (Wg @ x)^T over all keys
    # w11s_ref: (Cin, Cin)     f32          BN-scale-folded (w1 @ wg)
    # w2s_ref : (Cin, P)       f32          BN-scale-folded w2
    # bias_ref: (Cin, 1)       f32          folded eval-mode BatchNorm bias
    # o_ref   : (1, Cin, TQ)   f32
    x_tile = xt_ref[0]                     # (Cin, TQ)
    att = att_ref[0]                       # (TQ, HW)
    if att.dtype != jnp.bfloat16:
        # Per-tile cast in VMEM (VPU, free filler in the mem-bound regime);
        # avoids a standalone wrapper-side convert of the whole B*HW^2 tensor.
        att = att.astype(jnp.bfloat16)
    g = g_ref[0]                           # (HW, P) bf16

    # Attention-weighted g for this query tile, canonical MXU orientation.
    ag = jnp.dot(att, g, preferred_element_type=jnp.float32)          # (TQ, P)

    # x2 back to C-major (BN scale already folded): x2[c,q] = sum_p W2s[c,p] ag[q,p]
    x2 = lax.dot_general(w2s_ref[...], ag, (((1,), (1,)), ((), ())),
                         preferred_element_type=jnp.float32)          # (Cin, TQ)

    # x1 = scale * (w1 @ wg) @ x_tile, folded in the wrapper.
    x1 = jnp.dot(w11s_ref[...], x_tile,
                 preferred_element_type=jnp.float32)                  # (Cin, TQ)

    out = x1 + x2 + bias_ref[...]          # folded eval-mode BN (scale in weights)
    out = jnp.maximum(out, 0.0)            # relu
    o_ref[0] = (out + x_tile).astype(o_ref.dtype)   # + residual (lane-dense store)


def _vmem_capacity_bytes():
    try:
        return int(pltpu.get_tpu_info().vmem_capacity_bytes)
    except Exception:
        return 64 * 1024 * 1024            # conservative (v7x-sized) fallback


def _vmem_budget_bytes():
    cap = _vmem_capacity_bytes()
    # ~75% of a 128 MiB part (v5e/v6e), ~62% (~40 MiB) of v7x's 64 MiB,
    # leaving headroom for compiler scratch.
    return int(cap * (0.75 if cap >= (100 << 20) else 0.62))


def _vmem_need(tq, hw, cin, p, att_itemsize):
    """Estimated VMEM working set for one grid step (double-buffered tiles)."""
    need = 2 * tq * hw * att_itemsize              # att tile (double-buffered)
    if att_itemsize > 2:
        need += tq * hw * 2                        # in-kernel bf16 copy of att
    need += 2 * hw * max(p, 128) * 2               # g (bf16, lane-padded), x2 bufs
    need += 4 * cin * tq * 4                       # x tile + out tile, x2 bufs
    need += 2 * (cin * cin + 2 * cin * p + cin) * 4  # weights / bias
    need += tq * max(p, 128) * 4 + 3 * cin * tq * 4  # ag, x1, x2, out temporaries
    return need + (2 << 20)                        # slack


def _pick_tq(hw, cin, p, att_itemsize):
    """Largest TQ (multiple of 128 dividing HW) whose working set fits VMEM."""
    budget = _vmem_budget_bytes()
    cands = [t for t in (1024, 512, 256, 128) if t <= hw and hw % t == 0]
    if not cands:
        return hw
    for tq in cands:
        if _vmem_need(tq, hw, cin, p, att_itemsize) <= budget:
            return tq
    return cands[-1]


def snl_unit(x_nchw, att, wg, w1, w2, gamma, beta, run_mean, run_var,
             eps=1e-5, tq=None):
    """x_nchw: (B, Cin, H, W); att: (B, H*W, H*W) (f32 or bf16);
    wg: (P, Cin, 1, 1); w1, w2: (Cin, P, 1, 1); BN params: (Cin,).
    Returns (B, Cin, H, W) float32."""
    b, cin, h, w = x_nchw.shape
    hw = h * w
    p = wg.shape[0]
    att_itemsize = jnp.dtype(att.dtype).itemsize
    if tq is None:
        tq = _pick_tq(hw, cin, p, att_itemsize)
    assert hw % tq == 0 and (tq == hw or tq % 128 == 0)

    # Free view: NCHW -> (B, Cin, HW).  No transposes of x in the wrapper.
    x_mat = x_nchw.reshape(b, cin, hw)

    wg2 = wg.reshape(p, cin).astype(jnp.float32)       # (P, Cin)
    w12 = w1.reshape(cin, p).astype(jnp.float32)       # (Cin, P)
    w22 = w2.reshape(cin, p).astype(jnp.float32)       # (Cin, P)

    inv_std = 1.0 / jnp.sqrt(run_var + eps)
    scale = gamma * inv_std                            # (Cin,)
    bias = (beta - run_mean * scale).reshape(cin, 1)   # (Cin, 1)

    # BN scale folded into the projection weights (exact, per output channel).
    w11s = scale[:, None] * jnp.dot(w12, wg2)          # (Cin, Cin)
    w22s = scale[:, None] * w22                        # (Cin, P)

    # g = (Wg @ x)^T, once per batch, (B, HW, P) bf16 so the in-kernel att
    # matmul is the canonical A(TQ,HW) @ B(HW,P) MXU form.
    g_hp = jnp.einsum('pc,bcn->bnp', wg2, x_mat).astype(jnp.bfloat16)

    grid = (b, hw // tq)

    flops = 2 * b * hw * (hw * p + cin * p + cin * cin)
    bytes_accessed = (att.size * att_itemsize          # att read (dominant)
                      + x_mat.size * 4                 # x read
                      + b * cin * hw * 4               # out write
                      + b * hw * p * 2                 # g read (once per batch)
                      + (w11s.size + w22s.size + cin) * 4)
    cost = pl.CostEstimate(flops=flops, transcendentals=0,
                           bytes_accessed=bytes_accessed)

    cp_kwargs = dict(dimension_semantics=("parallel", "parallel"))
    need = _vmem_need(tq, hw, cin, p, att_itemsize)
    if need > 16 * 1024 * 1024:
        cp_kwargs["vmem_limit_bytes"] = max(_vmem_budget_bytes(), int(need))

    out_mat = pl.pallas_call(
        snl_kernel,
        out_shape=jax.ShapeDtypeStruct((b, cin, hw), jnp.float32),
        grid_spec=pltpu.PrefetchScalarGridSpec(
            num_scalar_prefetch=0,
            grid=grid,
            in_specs=[
                pl.BlockSpec((1, cin, tq), lambda i, j: (i, 0, j)),  # x query tile
                pl.BlockSpec((1, tq, hw), lambda i, j: (i, j, 0)),   # att row tile
                pl.BlockSpec((1, hw, p), lambda i, j: (i, 0, 0)),    # g (all keys)
                pl.BlockSpec((cin, cin), lambda i, j: (0, 0)),       # scale*(w1@wg)
                pl.BlockSpec((cin, p), lambda i, j: (0, 0)),         # scale*w2
                pl.BlockSpec((cin, 1), lambda i, j: (0, 0)),         # BN bias
            ],
            out_specs=pl.BlockSpec((1, cin, tq), lambda i, j: (i, 0, j)),
        ),
        compiler_params=pltpu.CompilerParams(**cp_kwargs),
        cost_estimate=cost,
    )(x_mat, att, g_hp, w11s, w22s, bias)

    # Free view back to NCHW.
    return out_mat.reshape(b, cin, h, w)


def ref_forward(x, att, wg, w1, w2, gamma, beta, mean, var, eps=1e-5):
    """Pure-JAX reference mirroring the PyTorch forward (eval-mode BN)."""
    b, cin, h, w = x.shape
    p = wg.shape[0]
    wg2, w12, w22 = wg.reshape(p, cin), w1.reshape(cin, p), w2.reshape(cin, p)
    g = jnp.einsum('bchw,pc->bphw', x, wg2)                    # (b, P, h, w)
    gm = g.reshape(b, p, h * w).transpose(0, 2, 1)             # (b, hw, P)
    x1 = jnp.einsum('bphw,cp->bchw', g, w12)
    x2m = jnp.einsum('bij,bjp->bip', att, gm)                  # (b, hw, P)
    x2 = x2m.transpose(0, 2, 1).reshape(b, p, h, w)
    x2 = jnp.einsum('bphw,cp->bchw', x2, w22)
    out = x1 + x2
    bc = lambda v: v[None, :, None, None]
    out = (out - bc(mean)) / jnp.sqrt(bc(var) + eps) * bc(gamma) + bc(beta)
    out = jnp.maximum(out, 0.0)
    return out + x


if __name__ == "__main__":
    B, CIN, P, H, W = 2, 8, 4, 16, 16
    HW = H * W

    key = jax.random.PRNGKey(0)
    ks = jax.random.split(key, 9)
    x = jax.random.normal(ks[0], (B, CIN, H, W), jnp.float32)
    att = jax.nn.softmax(jax.random.normal(ks[1], (B, HW, HW), jnp.float32), axis=-1)
    wg = 0.1 * jax.random.normal(ks[2], (P, CIN, 1, 1), jnp.float32)
    w1 = 0.1 * jax.random.normal(ks[3], (CIN, P, 1, 1), jnp.float32)
    w2 = 0.1 * jax.random.normal(ks[4], (CIN, P, 1, 1), jnp.float32)
    gamma = jax.random.uniform(ks[5], (CIN,), jnp.float32, minval=0.5, maxval=1.5)
    beta = 0.1 * jax.random.normal(ks[6], (CIN,), jnp.float32)
    run_mean = 0.1 * jax.random.normal(ks[7], (CIN,), jnp.float32)
    run_var = jnp.abs(jax.random.normal(ks[8], (CIN,), jnp.float32)) + 0.5

    # tq=128 -> grid (B, HW//tq) = (2, 2): exercises the row-tiled att path.
    out = snl_unit(x, att, wg, w1, w2, gamma, beta, run_mean, run_var, tq=128)
    out = jax.block_until_ready(out)

    ref = jax.block_until_ready(
        ref_forward(x, att, wg, w1, w2, gamma, beta, run_mean, run_var))
    assert out.shape == (B, CIN, H, W)
    assert jnp.max(jnp.abs(out - ref)) < 5e-2, "mismatch vs reference"

    print("KERNEL_OK")
</pallas_src>

<mosaic_0001>
module attributes {stable_mosaic.version = 11 : i64} {
  func.func @snl_kernel(%arg0: i32, %arg1: i32, %arg2: memref<1x8x128xf32, #tpu.memory_space<vmem>>, %arg3: memref<1x128x256xf32, #tpu.memory_space<vmem>>, %arg4: memref<1x256x4xbf16, #tpu.memory_space<vmem>>, %arg5: memref<8x8xf32, #tpu.memory_space<vmem>>, %arg6: memref<8x4xf32, #tpu.memory_space<vmem>>, %arg7: memref<8x1xf32, #tpu.memory_space<vmem>>, %arg8: memref<1x8x128xf32, #tpu.memory_space<vmem>>) attributes {dimension_semantics = [#tpu.dimension_semantics<parallel>, #tpu.dimension_semantics<parallel>], iteration_bounds = array<i64: 2, 2>, scalar_prefetch = 0 : i64, scratch_operands = 0 : i64, tpu.core_type = #tpu.core_type<tc>, window_params = [{transform_indices = @transform_0, window_bounds = array<i64: 1, 8, 128>}, {transform_indices = @transform_1, window_bounds = array<i64: 1, 128, 256>}, {transform_indices = @transform_2, window_bounds = array<i64: 1, 256, 4>}, {pipeline_mode = #tpu.pipeline_mode<synchronous>, transform_indices = @transform_3, window_bounds = array<i64: 8, 8>}, {pipeline_mode = #tpu.pipeline_mode<synchronous>, transform_indices = @transform_4, window_bounds = array<i64: 8, 4>}, {pipeline_mode = #tpu.pipeline_mode<synchronous>, transform_indices = @transform_5, window_bounds = array<i64: 8, 1>}, {transform_indices = @transform_6, window_bounds = array<i64: 1, 8, 128>}]} {
    %c0 = arith.constant 0 : index
    %c0_0 = arith.constant 0 : index
    %c0_1 = arith.constant 0 : index
    %0 = vector.load %arg2[%c0, %c0_0, %c0_1] : memref<1x8x128xf32, #tpu.memory_space<vmem>>, vector<1x8x128xf32>
    %1 = vector.shape_cast %0 : vector<1x8x128xf32> to vector<8x128xf32>
    %c0_2 = arith.constant 0 : index
    %c0_3 = arith.constant 0 : index
    %c0_4 = arith.constant 0 : index
    %2 = vector.load %arg3[%c0_2, %c0_3, %c0_4] : memref<1x128x256xf32, #tpu.memory_space<vmem>>, vector<1x128x256xf32>
    %3 = vector.shape_cast %2 : vector<1x128x256xf32> to vector<128x256xf32>
    %4 = arith.truncf %3 : vector<128x256xf32> to vector<128x256xbf16>
    %c0_5 = arith.constant 0 : index
    %c0_6 = arith.constant 0 : index
    %c0_7 = arith.constant 0 : index
    %5 = vector.load %arg4[%c0_5, %c0_6, %c0_7] : memref<1x256x4xbf16, #tpu.memory_space<vmem>>, vector<1x256x4xbf16>
    %6 = vector.shape_cast %5 : vector<1x256x4xbf16> to vector<256x4xbf16>
    %cst = arith.constant dense<0.000000e+00> : vector<128x4xf32>
    %7 = tpu.matmul %4, %6, %cst {dimension_numbers = #tpu.dot_dimension_numbers<[1], [0], [0], [1], [0, 0, 1, 1], [], []>} : vector<128x256xbf16>, vector<256x4xbf16>, vector<128x4xf32> -> vector<128x4xf32>
    %c0_8 = arith.constant 0 : index
    %c0_9 = arith.constant 0 : index
    %8 = vector.load %arg6[%c0_8, %c0_9] : memref<8x4xf32, #tpu.memory_space<vmem>>, vector<8x4xf32>
    %cst_10 = arith.constant dense<0.000000e+00> : vector<8x128xf32>
    %9 = tpu.matmul %8, %7, %cst_10 {dimension_numbers = #tpu.dot_dimension_numbers<[1], [1], [0], [0], [0, 0, 1, 0], [], []>} : vector<8x4xf32>, vector<128x4xf32>, vector<8x128xf32> -> vector<8x128xf32>
    %c0_11 = arith.constant 0 : index
    %c0_12 = arith.constant 0 : index
    %10 = vector.load %arg5[%c0_11, %c0_12] : memref<8x8xf32, #tpu.memory_space<vmem>>, vector<8x8xf32>
    %cst_13 = arith.constant dense<0.000000e+00> : vector<8x128xf32>
    %11 = tpu.matmul %10, %1, %cst_13 {dimension_numbers = #tpu.dot_dimension_numbers<[1], [0], [0], [1], [0, 0, 1, 1], [], []>} : vector<8x8xf32>, vector<8x128xf32>, vector<8x128xf32> -> vector<8x128xf32>
    %12 = arith.addf %11, %9 : vector<8x128xf32>
    %c0_14 = arith.constant 0 : index
    %c0_15 = arith.constant 0 : index
    %13 = vector.load %arg7[%c0_14, %c0_15] : memref<8x1xf32, #tpu.memory_space<vmem>>, vector<8x1xf32>
    %14 = vector.broadcast %13 : vector<8x1xf32> to vector<8x128xf32>
    %15 = arith.addf %12, %14 : vector<8x128xf32>
    %cst_16 = arith.constant 0.000000e+00 : f32
    %16 = vector.broadcast %cst_16 : f32 to vector<8x128xf32>
    %17 = arith.maximumf %15, %16 : vector<8x128xf32>
    %18 = arith.addf %17, %1 : vector<8x128xf32>
    %c0_17 = arith.constant 0 : index
    %c0_18 = arith.constant 0 : index
    %c0_19 = arith.constant 0 : index
    %19 = vector.load %arg8[%c0_17, %c0_18, %c0_19] : memref<1x8x128xf32, #tpu.memory_space<vmem>>, vector<1x8x128xf32>
    %20 = vector.shape_cast %19 : vector<1x8x128xf32> to vector<8x128xf32>
    %21 = vector.shape_cast %18 : vector<8x128xf32> to vector<1x8x128xf32>
    tpu.vector_store %arg8[%c0_17, %c0_18, %c0_19], %21 {strides = array<i32>} : memref<1x8x128xf32, #tpu.memory_space<vmem>>, vector<1x8x128xf32>,
    return
  }
  func.func @transform_0(%arg0: i32, %arg1: i32) -> (i32, i32, i32) {
    %c0_i32 = arith.constant 0 : i32
    %c0_i32_0 = arith.constant 0 : i32
    return %arg0, %c0_i32, %arg1 : i32, i32, i32
  }
  func.func @transform_1(%arg0: i32, %arg1: i32) -> (i32, i32, i32) {
    %c0_i32 = arith.constant 0 : i32
    %c0_i32_0 = arith.constant 0 : i32
    return %arg0, %arg1, %c0_i32 : i32, i32, i32
  }
  func.func @transform_2(%arg0: i32, %arg1: i32) -> (i32, i32, i32) {
    %c0_i32 = arith.constant 0 : i32
    %c0_i32_0 = arith.constant 0 : i32
    %c0_i32_1 = arith.constant 0 : i32
    return %arg0, %c0_i32, %c0_i32_0 : i32, i32, i32
  }
  func.func @transform_3(%arg0: i32, %arg1: i32) -> (i32, i32) {
    %c0_i32 = arith.constant 0 : i32
    %c0_i32_0 = arith.constant 0 : i32
    %c0_i32_1 = arith.constant 0 : i32
    return %c0_i32, %c0_i32_0 : i32, i32
  }
  func.func @transform_4(%arg0: i32, %arg1: i32) -> (i32, i32) {
    %c0_i32 = arith.constant 0 : i32
    %c0_i32_0 = arith.constant 0 : i32
    %c0_i32_1 = arith.constant 0 : i32
    return %c0_i32, %c0_i32_0 : i32, i32
  }
  func.func @transform_5(%arg0: i32, %arg1: i32) -> (i32, i32) {
    %c0_i32 = arith.constant 0 : i32
    %c0_i32_0 = arith.constant 0 : i32
    %c0_i32_1 = arith.constant 0 : i32
    return %c0_i32, %c0_i32_0 : i32, i32
  }
  func.func @transform_6(%arg0: i32, %arg1: i32) -> (i32, i32, i32) {
    %c0_i32 = arith.constant 0 : i32
    %c0_i32_0 = arith.constant 0 : i32
    return %arg0, %c0_i32, %arg1 : i32, i32, i32
  }
}

</mosaic_0001>

<llo_original>
// kernel: tpu_custom_call.1
$region0: #{tpu_custom_call.1}
  #allocation0 [shape = 'u32[]', space=smem, size = 0x4, offset = 0x4, fixed_abs, tag = 'smem constant byte address 0x4 - core index']
  #allocation1 [shape = 'u32[144,128]{1,0:T(1,128)}', space=vmem, size = 0x12000, scoped, tag = 'internal scratch']
  %s0 = inlined_call_operand.vmem [shape: f32[2,8,256], index: 0, kind: input, shape index: {}]
  %s1 = inlined_call_operand.hbm [shape: f32[2,256,256], index: 1, kind: input, shape index: {}]
  %s2 = inlined_call_operand.vmem [shape: bf16[2,256,4], index: 2, kind: input, shape index: {}]
  %s3 = inlined_call_operand.vmem [shape: f32[8,8], index: 3, kind: input, shape index: {}]
  %s4 = inlined_call_operand.vmem [shape: f32[8,4], index: 4, kind: input, shape index: {}]
  %s5 = inlined_call_operand.vmem [shape: f32[8,1], index: 5, kind: input, shape index: {}]
  %s6 = inlined_call_operand.hbm [shape: f32[2,8,256], index: 6, kind: output, shape index: {}]
  %s7 = sld [smem:[#allocation0]]
  $region61: #{tpu_custom_call.1} parent=0
    _
  %s9 = ssub.s32 1, %s7
  %s10 = scalar_select 0, %s9, %s7
  $region1: #{tpu_custom_call.1} parent=0
    #allocation2 [shape = 'u8[262144]{0}', space=vmem, size = 0x40000, scoped, tag = 'input window, operand 1']
    #allocation3 [shape = 's32[2]{0}', space=sflag, size = 0x8, scoped, tag = 'scoped memory for tpu_custom_call.1']
    #allocation4 [shape = 's32[2]{0}', space=sflag, size = 0x8, scoped, tag = 'scoped memory for tpu_custom_call.1']
    #allocation5 [shape = 'u8[8192]{0}', space=vmem, size = 0x2000, scoped, tag = 'output window, operand 0']
    %11 = vsyncpa [#allocation3], 0
    %s12 = scalar_lea.sflag [#allocation3], 1
    %13 = vsyncpa %s12, 0
    %14 = vsyncpa [#allocation4], 0
    %s15 = scalar_lea.sflag [#allocation4], 1
    %16 = vsyncpa %s15, 0
    loop: start=0, step=1, limit=6
    $region2: #{tpu_custom_call.1} parent=1 // loop_pre_header
      _
    $region3: #{tpu_custom_call.1} parent=1 // loop_header
      %s18 = sphi 0, %s22
      %p19 = scmp.ge.s32.totalorder %s18, 6
      %s25 = sphi 0, %s37
      %s26 = sphi 0, %s33
      %s27 = sphi 0, %s25
      %s28 = sphi 0, %s26
      %s29 = sphi 0, %s27
      %s30 = sphi 0, %s28
      %s42 = sphi 0, %s44
      %s45 = sphi 0, %s42
      %s46 = sphi 0, %s45
      %s62 = sphi 0, %s46
      %s70 = sphi 0, %s72
      %s73 = sphi 0, %s70
      %s74 = sphi 0, %s73
      %s90 = sphi 0, %s74
      %s96 = sphi 0, %s98
      %s99 = sphi 0, %s96
      %s100 = sphi 0, %s99
      %s116 = sphi 0, %s100
      %s120 = sphi 0, %s120
      %s122 = sphi 0, %s120
      %s123 = sphi 0, %s122
      %s137 = sphi 0, %s123
      %s141 = sphi 0, %s141
      %s143 = sphi 0, %s141
      %s144 = sphi 0, %s143
      %s158 = sphi 0, %s144
      %s162 = sphi 0, %s162
      %s164 = sphi 0, %s162
      %s165 = sphi 0, %s164
      %s179 = sphi 0, %s165
      %s187 = sphi 0, %s189
      %s190 = sphi 0, %s187
      %s191 = sphi 0, %s190
      %s207 = sphi 0, %s191
    $region4: #{tpu_custom_call.1} parent=1 // loop_header_branch
      %21 = sbr.rel (%p19) target = $region8
    $region5: #{tpu_custom_call.1} parent=1 // loop_body
      %s23 = ssub.s32 %s18, 1
      %s24 = ssub.s32 %s18, 2
      %s31 = sadd.s32 1, %s26
      %p32 = scmp.ge.s32.totalorder %s31, 2
      %s33 = scalar_select %p32, 0, %s31
      %s34 = sadd.s32 1, %s25
      %s35 = scalar_select %p32, %s34, %s25
      %p36 = scmp.ge.s32.totalorder %s35, 2
      %s37 = scalar_select %p36, 0, %s35
      %s38 = ssub.s32 %s25, %s37
      %s39 = ssub.s32 %s26, %s33
      %s40 = sor.u32 %s38, %s39
      %p41 = scmp.eq.s32.totalorder %s40, 0
      %s43 = sadd.s32 %s42, 1
      %s44 = scalar_select %p41, %s42, %s43
      %p47 = pneg %p41
      %p48 = scmp.eq.s32.totalorder %s18, 3
      %p49 = por %p47, %p48
      %p50 = scmp.ne.s32.totalorder %s42, %s45
      %p51 = scmp.eq.s32.totalorder %s18, 0
      %p52 = por %p50, %p51
      %p53 = scmp.ne.s32.totalorder %s42, %s45
      %p54 = scmp.eq.s32.totalorder %s23, 3
      %p55 = por %p53, %p54
      %p56 = scmp.ne.s32.totalorder %s45, %s46
      %p57 = scmp.eq.s32.totalorder %s23, 0
      %p58 = por %p56, %p57
      %p59 = scmp.ne.s32.totalorder %s45, %s46
      %p60 = scmp.eq.s32.totalorder %s24, 3
      %p61 = por %p59, %p60
      %p63 = scmp.ne.s32.totalorder %s46, %s62
      %p64 = scmp.eq.s32.totalorder %s24, 0
      %p65 = por %p63, %p64
      %s66 = ssub.s32 %s25, %s37
      %s67 = ssub.s32 %s26, %s33
      %s68 = sor.u32 %s66, %s67
      %p69 = scmp.eq.s32.totalorder %s68, 0
      %s71 = sadd.s32 %s70, 1
      %s72 = scalar_select %p69, %s70, %s71
      %p75 = pneg %p69
      %p76 = scmp.eq.s32.totalorder %s18, 3
      %p77 = por %p75, %p76
      %p78 = scmp.ne.s32.totalorder %s70, %s73
      %p79 = scmp.eq.s32.totalorder %s18, 0
      %p80 = por %p78, %p79
      %p81 = scmp.ne.s32.totalorder %s70, %s73
      %p82 = scmp.eq.s32.totalorder %s23, 3
      %p83 = por %p81, %p82
      %p84 = scmp.ne.s32.totalorder %s73, %s74
      %p85 = scmp.eq.s32.totalorder %s23, 0
      %p86 = por %p84, %p85
      %p87 = scmp.ne.s32.totalorder %s73, %s74
      %p88 = scmp.eq.s32.totalorder %s24, 3
      %p89 = por %p87, %p88
      %p91 = scmp.ne.s32.totalorder %s74, %s90
      %p92 = scmp.eq.s32.totalorder %s24, 0
      %p93 = por %p91, %p92
      %s94 = ssub.s32 %s25, %s37
      %p95 = scmp.eq.s32.totalorder %s94, 0
      %s97 = sadd.s32 %s96, 1
      %s98 = scalar_select %p95, %s96, %s97
      %p101 = pneg %p95
      %p102 = scmp.eq.s32.totalorder %s18, 3
      %p103 = por %p101, %p102
      %p104 = scmp.ne.s32.totalorder %s96, %s99
      %p105 = scmp.eq.s32.totalorder %s18, 0
      %p106 = por %p104, %p105
      %p107 = scmp.ne.s32.totalorder %s96, %s99
      %p108 = scmp.eq.s32.totalorder %s23, 3
      %p109 = por %p107, %p108
      %p110 = scmp.ne.s32.totalorder %s99, %s100
      %p111 = scmp.eq.s32.totalorder %s23, 0
      %p112 = por %p110, %p111
      %p113 = scmp.ne.s32.totalorder %s99, %s100
      %p114 = scmp.eq.s32.totalorder %s24, 3
      %p115 = por %p113, %p114
      %p117 = scmp.ne.s32.totalorder %s100, %s116
      %p118 = scmp.eq.s32.totalorder %s24, 0
      %p119 = por %p117, %p118
      %s121 = sadd.s32 %s120, 1
      %p124 = scmp.eq.s32.totalorder %s18, 3
      %p125 = scmp.ne.s32.totalorder %s120, %s122
      %p126 = scmp.eq.s32.totalorder %s18, 0
      %p127 = por %p125, %p126
      %p128 = scmp.ne.s32.totalorder %s120, %s122
      %p129 = scmp.eq.s32.totalorder %s23, 3
      %p130 = por %p128, %p129
      %p131 = scmp.ne.s32.totalorder %s122, %s123
      %p132 = scmp.eq.s32.totalorder %s23, 0
      %p133 = por %p131, %p132
      %p134 = scmp.ne.s32.totalorder %s122, %s123
      %p135 = scmp.eq.s32.totalorder %s24, 3
      %p136 = por %p134, %p135
      %p138 = scmp.ne.s32.totalorder %s123, %s137
      %p139 = scmp.eq.s32.totalorder %s24, 0
      %p140 = por %p138, %p139
      %s142 = sadd.s32 %s141, 1
      %p145 = scmp.eq.s32.totalorder %s18, 3
      %p146 = scmp.ne.s32.totalorder %s141, %s143
      %p147 = scmp.eq.s32.totalorder %s18, 0
      %p148 = por %p146, %p147
      %p149 = scmp.ne.s32.totalorder %s141, %s143
      %p150 = scmp.eq.s32.totalorder %s23, 3
      %p151 = por %p149, %p150
      %p152 = scmp.ne.s32.totalorder %s143, %s144
      %p153 = scmp.eq.s32.totalorder %s23, 0
      %p154 = por %p152, %p153
      %p155 = scmp.ne.s32.totalorder %s143, %s144
      %p156 = scmp.eq.s32.totalorder %s24, 3
      %p157 = por %p155, %p156
      %p159 = scmp.ne.s32.totalorder %s144, %s158
      %p160 = scmp.eq.s32.totalorder %s24, 0
      %p161 = por %p159, %p160
      %s163 = sadd.s32 %s162, 1
      %p166 = scmp.eq.s32.totalorder %s18, 3
      %p167 = scmp.ne.s32.totalorder %s162, %s164
      %p168 = scmp.eq.s32.totalorder %s18, 0
      %p169 = por %p167, %p168
      %p170 = scmp.ne.s32.totalorder %s162, %s164
      %p171 = scmp.eq.s32.totalorder %s23, 3
      %p172 = por %p170, %p171
      %p173 = scmp.ne.s32.totalorder %s164, %s165
      %p174 = scmp.eq.s32.totalorder %s23, 0
      %p175 = por %p173, %p174
      %p176 = scmp.ne.s32.totalorder %s164, %s165
      %p177 = scmp.eq.s32.totalorder %s24, 3
      %p178 = por %p176, %p177
      %p180 = scmp.ne.s32.totalorder %s165, %s179
      %p181 = scmp.eq.s32.totalorder %s24, 0
      %p182 = por %p180, %p181
      %s183 = ssub.s32 %s25, %s37
      %s184 = ssub.s32 %s26, %s33
      %s185 = sor.u32 %s183, %s184
      %p186 = scmp.eq.s32.totalorder %s185, 0
      %s188 = sadd.s32 %s187, 1
      %s189 = scalar_select %p186, %s187, %s188
      %p192 = pneg %p186
      %p193 = scmp.eq.s32.totalorder %s18, 3
      %p194 = por %p192, %p193
      %p195 = scmp.ne.s32.totalorder %s187, %s190
      %p196 = scmp.eq.s32.totalorder %s18, 0
      %p197 = por %p195, %p196
      %p198 = scmp.ne.s32.totalorder %s187, %s190
      %p199 = scmp.eq.s32.totalorder %s23, 3
      %p200 = por %p198, %p199
      %p201 = scmp.ne.s32.totalorder %s190, %s191
      %p202 = scmp.eq.s32.totalorder %s23, 0
      %p203 = por %p201, %p202
      %p204 = scmp.ne.s32.totalorder %s190, %s191
      %p205 = scmp.eq.s32.totalorder %s24, 3
      %p206 = por %p204, %p205
      %p208 = scmp.ne.s32.totalorder %s191, %s207
      %p209 = scmp.eq.s32.totalorder %s24, 0
      %p210 = por %p208, %p209
      %p211 = scmp.le.s32.totalorder 1, %s18
      %p212 = scmp.lt.s32.totalorder %s18, 5
      %p213 = pnand %p211, %p212
      %p214 = pneg %p213
      // Predicated region
      $region9: #{tpu_custom_call.1} parent=5 // pred_check
        _
      $region10: #{tpu_custom_call.1} parent=5 // pred_check_branch
        %216 = sbr.rel (%p213) target = $region12
      $region11: #{tpu_custom_call.1} parent=5 // pred_region
        %s217 = ssub.s32 %s18, 1
        // Predicated region
        $region13: #{tpu_custom_call.1} parent=11 // pred_check
          %p218 = pneg %p133
        $region14: #{tpu_custom_call.1} parent=11 // pred_check_branch
          %220 = sbr.rel (%p218) target = $region16
        $region15: #{tpu_custom_call.1} parent=11 // pred_region
          _
        $region16: #{tpu_custom_call.1} parent=11 // pred_fallthru
          _
        // Predicated region
        $region17: #{tpu_custom_call.1} parent=11 // pred_check
          %p221 = pneg %p154
        $region18: #{tpu_custom_call.1} parent=11 // pred_check_branch
          %223 = sbr.rel (%p221) target = $region20
        $region19: #{tpu_custom_call.1} parent=11 // pred_region
          _
        $region20: #{tpu_custom_call.1} parent=11 // pred_fallthru
          _
        // Predicated region
        $region21: #{tpu_custom_call.1} parent=11 // pred_check
          %p224 = pneg %p175
        $region22: #{tpu_custom_call.1} parent=11 // pred_check_branch
          %226 = sbr.rel (%p224) target = $region24
        $region23: #{tpu_custom_call.1} parent=11 // pred_region
          _
        $region24: #{tpu_custom_call.1} parent=11 // pred_fallthru
          _
      $region12: #{tpu_custom_call.1} parent=5 // pred_fallthru
        _
      %p227 = scmp.lt.s32.totalorder %s18, 4
      // Predicated region
      $region25: #{tpu_custom_call.1} parent=5 // pred_check
        %p228 = pneg %p227
      $region26: #{tpu_custom_call.1} parent=5 // pred_check_branch
        %230 = sbr.rel (%p228) target = $region28
      $region27: #{tpu_custom_call.1} parent=5 // pred_region
        // Predicated region
        $region29: #{tpu_custom_call.1} parent=27 // pred_check
          %p231 = pneg %p52
        $region30: #{tpu_custom_call.1} parent=27 // pred_check_branch
          %233 = sbr.rel (%p231) target = $region32
        $region31: #{tpu_custom_call.1} parent=27 // pred_region
          %p234 = scmp.lt.s32.totalorder %s25, 1
          %s235 = scalar_select %p234, %s25, 1
          %p236 = scmp.lt.s32.totalorder %s26, 1
          %s237 = scalar_select %p236, %s26, 1
          %s238 = smul.addr %s235, 2
          %s239 = sadd.s32 %s237, %s238
          %s240 = smul.addr %s239, 8
          %s241 = scalar_lea.vmem %s0, %s240
        $region32: #{tpu_custom_call.1} parent=27 // pred_fallthru
          _
        // Predicated region
        $region33: #{tpu_custom_call.1} parent=27 // pred_check
          %p242 = pneg %p80
        $region34: #{tpu_custom_call.1} parent=27 // pred_check_branch
          %244 = sbr.rel (%p242) target = $region36
        $region35: #{tpu_custom_call.1} parent=27 // pred_region
          %s245 = sand.u32 %s70, 1
          %s246 = scalar_lea.sflag [#allocation3], %s245
          %s247 = sand.u32 %s70, 1
          %s248 = smul.addr %s247, 256
          %s249 = scalar_lea.vmem [#allocation2], %s248
          %s250 = smul.u32 16, %s26
          %s252 = ssub.s32 4096, 4096
          %253 = vsyncadd %s246, %s252
          %s254 = smul.addr %s250, 2
          %s255 = smul.addr %s25, 64
          %s256 = sadd.s32 %s254, %s255
          %s257 = smul.addr %s256, 128
          %s258 = scalar_lea.hbm %s1, %s257
          %s259 = sshll.u32 %s249, 4
          %s260 = int_to_ptr.vmem [resolvable:$true] %s259
          %265 = dma.hbm_to_vmem [thread:$0]  %s258, 4096, %s260, %s246, 256, 256, 16
        $region36: #{tpu_custom_call.1} parent=27 // pred_fallthru
          _
        // Predicated region
        $region37: #{tpu_custom_call.1} parent=27 // pred_check
          %p266 = pneg %p106
        $region38: #{tpu_custom_call.1} parent=27 // pred_check_branch
          %268 = sbr.rel (%p266) target = $region40
        $region39: #{tpu_custom_call.1} parent=27 // pred_region
          %p269 = scmp.lt.s32.totalorder %s25, 1
          %s270 = scalar_select %p269, %s25, 1
          %s271 = smul.addr %s270, 32
          %s272 = smul.addr %s271, 4
          %s273 = scalar_lea.vmem %s2, %s272
        $region40: #{tpu_custom_call.1} parent=27 // pred_fallthru
          _
      $region28: #{tpu_custom_call.1} parent=5 // pred_fallthru
        _
      %p274 = scmp.le.s32.totalorder 1, %s18
      %p275 = scmp.lt.s32.totalorder %s18, 5
      %p276 = pnand %p274, %p275
      %p277 = pneg %p276
      // Predicated region
      $region41: #{tpu_custom_call.1} parent=5 // pred_check
        _
      $region42: #{tpu_custom_call.1} parent=5 // pred_check_branch
        %279 = sbr.rel (%p276) target = $region44
      $region43: #{tpu_custom_call.1} parent=5 // pred_region
        %s280 = ssub.s32 %s18, 1
        %s281 = sand.u32 %s73, 1
        %s282 = scalar_lea.sflag [#allocation3], %s281
        %s283 = sand.u32 %s73, 1
        %s284 = smul.addr %s283, 256
        %s285 = scalar_lea.vmem [#allocation2], %s284
        // Predicated region
        $region45: #{tpu_custom_call.1} parent=43 // pred_check
          %p286 = pneg %p86
        $region46: #{tpu_custom_call.1} parent=43 // pred_check_branch
          %288 = sbr.rel (%p286) target = $region48
        $region47: #{tpu_custom_call.1} parent=43 // pred_region
          %289 = dma.done %s282, 4096
        $region48: #{tpu_custom_call.1} parent=43 // pred_fallthru
          _
        %p290 = scmp.lt.s32.totalorder %s27, 1
        %s291 = scalar_select %p290, %s27, 1
        %p292 = scmp.lt.s32.totalorder %s28, 1
        %s293 = scalar_select %p292, %s28, 1
        %s294 = smul.addr %s291, 2
        %s295 = sadd.s32 %s293, %s294
        %s296 = smul.addr %s295, 8
        %s297 = scalar_lea.vmem %s0, %s296
        %p298 = pneg %p58
        %p299 = pneg %p55
        %s300 = sand.u32 %s73, 1
        %s301 = scalar_lea.sflag [#allocation3], %s300
        %s302 = sand.u32 %s73, 1
        %s303 = smul.addr %s302, 256
        %s304 = scalar_lea.vmem [#allocation2], %s303
        %p305 = pneg %p86
        %p306 = pneg %p83
        %p307 = scmp.lt.s32.totalorder %s27, 1
        %s308 = scalar_select %p307, %s27, 1
        %s309 = smul.addr %s308, 32
        %s310 = smul.addr %s309, 4
        %s311 = scalar_lea.vmem %s2, %s310
        %p312 = pneg %p112
        %p313 = pneg %p109
        %p314 = pneg %p133
        %p315 = pneg %p130
        %p316 = pneg %p154
        %p317 = pneg %p151
        %p318 = pneg %p175
        %p319 = pneg %p172
        %p320 = pneg %p203
        %p321 = pneg %p200
        %s322 = sand.u32 %s190, 1
        %s323 = scalar_lea.sflag [#allocation4], %s322
        %s324 = sand.u32 %s190, 1
        %s325 = smul.addr %s324, 8
        %s326 = scalar_lea.vmem [#allocation5], %s325
        %p327 = scmp.lt.s32.totalorder %s27, 1
        %s328 = scalar_select %p327, %s27, 1
        %p329 = scmp.lt.s32.totalorder %s28, 1
        %s330 = scalar_select %p329, %s28, 1
        %s331 = smul.addr %s328, 2
        %s332 = sadd.s32 %s330, %s331
        %s333 = smul.addr %s332, 8
        %s334 = scalar_lea.vmem %s0, %s333
        %s335 = smul.u32 16, %s28
        %p336 = scmp.lt.s32.totalorder %s27, 1
        %s337 = scalar_select %p336, %s27, 1
        %s338 = smul.addr %s337, 32
        %s339 = smul.addr %s338, 4
        %s340 = scalar_lea.vmem %s2, %s339
        %v342 = vld [vmem:[%s334] sm:$0xff]
        %v343 = vld [vmem:[%s285] sm:$0xff]
        %v344 = vld [vmem:[%s285 + $0x8] sm:$0xff]
        %v345 = vld [vmem:[%s285 + $0x10] sm:$0xff]
        %v346 = vld [vmem:[%s285 + $0x18] sm:$0xff]
        %v347 = vld [vmem:[%s285 + $0x20] sm:$0xff]
        %v348 = vld [vmem:[%s285 + $0x28] sm:$0xff]
        %v349 = vld [vmem:[%s285 + $0x30] sm:$0xff]
        %v350 = vld [vmem:[%s285 + $0x38] sm:$0xff]
        %v351 = vld [vmem:[%s285 + $0x40] sm:$0xff]
        %v352 = vld [vmem:[%s285 + $0x48] sm:$0xff]
        %v353 = vld [vmem:[%s285 + $0x50] sm:$0xff]
        %v354 = vld [vmem:[%s285 + $0x58] sm:$0xff]
        %v355 = vld [vmem:[%s285 + $0x60] sm:$0xff]
        %v356 = vld [vmem:[%s285 + $0x68] sm:$0xff]
        %v357 = vld [vmem:[%s285 + $0x70] sm:$0xff]
        %v358 = vld [vmem:[%s285 + $0x78] sm:$0xff]
        %v359 = vld [vmem:[%s285 + $0x80] sm:$0xff]
        %v360 = vld [vmem:[%s285 + $0x88] sm:$0xff]
        %v361 = vld [vmem:[%s285 + $0x90] sm:$0xff]
        %v362 = vld [vmem:[%s285 + $0x98] sm:$0xff]
        %v363 = vld [vmem:[%s285 + $0xa0] sm:$0xff]
        %v364 = vld [vmem:[%s285 + $0xa8] sm:$0xff]
        %v365 = vld [vmem:[%s285 + $0xb0] sm:$0xff]
        %v366 = vld [vmem:[%s285 + $0xb8] sm:$0xff]
        %v367 = vld [vmem:[%s285 + $0xc0] sm:$0xff]
        %v368 = vld [vmem:[%s285 + $0xc8] sm:$0xff]
        %v369 = vld [vmem:[%s285 + $0xd0] sm:$0xff]
        %v370 = vld [vmem:[%s285 + $0xd8] sm:$0xff]
        %v371 = vld [vmem:[%s285 + $0xe0] sm:$0xff]
        %v372 = vld [vmem:[%s285 + $0xe8] sm:$0xff]
        %v373 = vld [vmem:[%s285 + $0xf0] sm:$0xff]
        %v374 = vld [vmem:[%s285 + $0xf8] sm:$0xff]
        %v375 = vpack.c.bf16 %v345, %v343
        %v376 = vpack.c.bf16 %v346, %v344
        %v377 = vpack.c.bf16 %v349, %v347
        %v378 = vpack.c.bf16 %v350, %v348
        %v379 = vpack.c.bf16 %v353, %v351
        %v380 = vpack.c.bf16 %v354, %v352
        %v381 = vpack.c.bf16 %v357, %v355
        %v382 = vpack.c.bf16 %v358, %v356
        %v383 = vpack.c.bf16 %v361, %v359
        %v384 = vpack.c.bf16 %v362, %v360
        %v385 = vpack.c.bf16 %v365, %v363
        %v386 = vpack.c.bf16 %v366, %v364
        %v387 = vpack.c.bf16 %v369, %v367
        %v388 = vpack.c.bf16 %v370, %v368
        %v389 = vpack.c.bf16 %v373, %v371
        %v390 = vpack.c.bf16 %v374, %v372
        %v391 = vld [vmem:[%s340] sm:$0xf]
        %v392 = vld [vmem:[%s340 + $0x4] sm:$0xf]
        %v393 = vld [vmem:[%s340 + $0x8] sm:$0xf]
        %v394 = vld [vmem:[%s340 + $0xc] sm:$0xf]
        %v395 = vld [vmem:[%s340 + $0x10] sm:$0xf]
        %v396 = vld [vmem:[%s340 + $0x14] sm:$0xf]
        %v397 = vld [vmem:[%s340 + $0x18] sm:$0xf]
        %v398 = vld [vmem:[%s340 + $0x1c] sm:$0xf]
        %v399 = vld [vmem:[%s340 + $0x20] sm:$0xf]
        %v400 = vld [vmem:[%s340 + $0x24] sm:$0xf]
        %v401 = vld [vmem:[%s340 + $0x28] sm:$0xf]
        %v402 = vld [vmem:[%s340 + $0x2c] sm:$0xf]
        %v403 = vld [vmem:[%s340 + $0x30] sm:$0xf]
        %v404 = vld [vmem:[%s340 + $0x34] sm:$0xf]
        %v405 = vld [vmem:[%s340 + $0x38] sm:$0xf]
        %v406 = vld [vmem:[%s340 + $0x3c] sm:$0xf]
        %v407 = vld [vmem:[%s340 + $0x40] sm:$0xf]
        %v408 = vld [vmem:[%s340 + $0x44] sm:$0xf]
        %v409 = vld [vmem:[%s340 + $0x48] sm:$0xf]
        %v410 = vld [vmem:[%s340 + $0x4c] sm:$0xf]
        %v411 = vld [vmem:[%s340 + $0x50] sm:$0xf]
        %v412 = vld [vmem:[%s340 + $0x54] sm:$0xf]
        %v413 = vld [vmem:[%s340 + $0x58] sm:$0xf]
        %v414 = vld [vmem:[%s340 + $0x5c] sm:$0xf]
        %v415 = vld [vmem:[%s340 + $0x60] sm:$0xf]
        %v416 = vld [vmem:[%s340 + $0x64] sm:$0xf]
        %v417 = vld [vmem:[%s340 + $0x68] sm:$0xf]
        %v418 = vld [vmem:[%s340 + $0x6c] sm:$0xf]
        %v419 = vld [vmem:[%s340 + $0x70] sm:$0xf]
        %v420 = vld [vmem:[%s340 + $0x74] sm:$0xf]
        %v421 = vld [vmem:[%s340 + $0x78] sm:$0xf]
        %v422 = vld [vmem:[%s340 + $0x7c] sm:$0xf]
        %v455 = vunpack.c.l.b16 %v391
        %v456 = vunpack.c.l.b16 %v392
        %v457 = vunpack.c.l.b16 %v393
        %v458 = vunpack.c.l.b16 %v394
        %v459 = vunpack.c.l.b16 %v395
        %v460 = vunpack.c.l.b16 %v396
        %v461 = vunpack.c.l.b16 %v397
        %v462 = vunpack.c.l.b16 %v398
        %v463 = vunpack.c.l.b16 %v399
        %v464 = vunpack.c.l.b16 %v400
        %v465 = vunpack.c.l.b16 %v401
        %v466 = vunpack.c.l.b16 %v402
        %v467 = vunpack.c.l.b16 %v403
        %v468 = vunpack.c.l.b16 %v404
        %v469 = vunpack.c.l.b16 %v405
        %v470 = vunpack.c.l.b16 %v406
        %v471 = vunpack.c.l.b16 %v407
        %v472 = vunpack.c.l.b16 %v408
        %v473 = vunpack.c.l.b16 %v409
        %v474 = vunpack.c.l.b16 %v410
        %v475 = vunpack.c.l.b16 %v411
        %v476 = vunpack.c.l.b16 %v412
        %v477 = vunpack.c.l.b16 %v413
        %v478 = vunpack.c.l.b16 %v414
        %v479 = vunpack.c.l.b16 %v415
        %v480 = vunpack.c.l.b16 %v416
        %v481 = vunpack.c.l.b16 %v417
        %v482 = vunpack.c.l.b16 %v418
        %v483 = vunpack.c.l.b16 %v419
        %v484 = vunpack.c.l.b16 %v420
        %v485 = vunpack.c.l.b16 %v421
        %v486 = vunpack.c.l.b16 %v422
        %v487 = vpack.c.b16 %v456, %v455
        %v488 = vpack.c.b16 %v458, %v457
        %v489 = vpack.c.b16 %v460, %v459
        %v490 = vpack.c.b16 %v462, %v461
        %v491 = vpack.c.b16 %v464, %v463
        %v492 = vpack.c.b16 %v466, %v465
        %v493 = vpack.c.b16 %v468, %v467
        %v494 = vpack.c.b16 %v470, %v469
        %v495 = vpack.c.b16 %v472, %v471
        %v496 = vpack.c.b16 %v474, %v473
        %v497 = vpack.c.b16 %v476, %v475
        %v498 = vpack.c.b16 %v478, %v477
        %v499 = vpack.c.b16 %v480, %v479
        %v500 = vpack.c.b16 %v482, %v481
        %v501 = vpack.c.b16 %v484, %v483
        %v502 = vpack.c.b16 %v486, %v485
        %519 = vmatprep.subr.bf16.mxu0 0
        %520 = vmatpush1.bf16.msra.mxu0 %v487
        %521 = vmatprep.subr.bf16.mxu0 0
        %522 = vmatpush1.bf16.msra.mxu0 %v488
        %523 = vmatprep.subr.bf16.mxu0 0
        %524 = vmatpush1.bf16.msra.mxu0 %v489
        %525 = vmatprep.subr.bf16.mxu0 0
        %526 = vmatpush1.bf16.msra.mxu0 %v490
        %527 = vmatprep.subr.bf16.mxu0 0
        %528 = vmatpush1.bf16.msra.mxu0 %v491
        %529 = vmatprep.subr.bf16.mxu0 0
        %530 = vmatpush1.bf16.msra.mxu0 %v492
        %531 = vmatprep.subr.bf16.mxu0 0
        %532 = vmatpush1.bf16.msra.mxu0 %v493
        %533 = vmatprep.subr.bf16.mxu0 0
        %534 = vmatpush1.bf16.msra.mxu0 %v494
        %535 = vmatprep.subr.bf16.mxu0 0
        %536 = vmatpush1.bf16.msra.mxu0 %v495
        %537 = vmatprep.subr.bf16.mxu0 0
        %538 = vmatpush1.bf16.msra.mxu0 %v496
        %539 = vmatprep.subr.bf16.mxu0 0
        %540 = vmatpush1.bf16.msra.mxu0 %v497
        %541 = vmatprep.subr.bf16.mxu0 0
        %542 = vmatpush1.bf16.msra.mxu0 %v498
        %543 = vmatprep.subr.bf16.mxu0 0
        %544 = vmatpush1.bf16.msra.mxu0 %v499
        %545 = vmatprep.subr.bf16.mxu0 0
        %546 = vmatpush1.bf16.msra.mxu0 %v500
        %547 = vmatprep.subr.bf16.mxu0 0
        %548 = vmatpush1.bf16.msra.mxu0 %v501
        %549 = vmatprep.subr.bf16.mxu0 0
        %550 = vmatpush1.bf16.msra.mxu0 %v502
        %551 = vmatprep.mubr.bf16.mxu0 %v376
        %552 = vmatmul.mubr.bf16.gmra.mrb[0].mxu0 %v375
        %v553 = vpop.f32.mrb[0].mxu0
        %v554 = vadd.f32 0.0, %v553
        %v555 = vpop.f32.mrb[0].mxu0
        %v556 = vpop.f32.mrb[0].mxu0
        %v557 = vadd.f32 0.0, %v556
        %v558 = vpop.f32.mrb[0].mxu0
        %559 = vmatprep.mubr.bf16.mxu0 %v378
        %560 = vmatmul.mubr.bf16.gmra.mrb[0].mxu0 %v377
        %v561 = vpop.f32.mrb[0].mxu0
        %v562 = vadd.f32 0.0, %v561
        %v563 = vpop.f32.mrb[0].mxu0
        %v564 = vpop.f32.mrb[0].mxu0
        %v565 = vadd.f32 0.0, %v564
        %v566 = vpop.f32.mrb[0].mxu0
        %567 = vmatprep.mubr.bf16.mxu0 %v380
        %568 = vmatmul.mubr.bf16.gmra.mrb[0].mxu0 %v379
        %v569 = vpop.f32.mrb[0].mxu0
        %v570 = vadd.f32 0.0, %v569
        %v571 = vpop.f32.mrb[0].mxu0
        %v572 = vpop.f32.mrb[0].mxu0
        %v573 = vadd.f32 0.0, %v572
        %v574 = vpop.f32.mrb[0].mxu0
        %575 = vmatprep.mubr.bf16.mxu0 %v382
        %576 = vmatmul.mubr.bf16.gmra.mrb[0].mxu0 %v381
        %v577 = vpop.f32.mrb[0].mxu0
        %v578 = vadd.f32 0.0, %v577
        %v579 = vpop.f32.mrb[0].mxu0
        %v580 = vpop.f32.mrb[0].mxu0
        %v581 = vadd.f32 0.0, %v580
        %v582 = vpop.f32.mrb[0].mxu0
        %583 = vmatprep.mubr.bf16.mxu0 %v384
        %584 = vmatmul.mubr.bf16.gmra.mrb[0].mxu0 %v383
        %v585 = vpop.f32.mrb[0].mxu0
        %v586 = vadd.f32 0.0, %v585
        %v587 = vpop.f32.mrb[0].mxu0
        %v588 = vpop.f32.mrb[0].mxu0
        %v589 = vadd.f32 0.0, %v588
        %v590 = vpop.f32.mrb[0].mxu0
        %591 = vmatprep.mubr.bf16.mxu0 %v386
        %592 = vmatmul.mubr.bf16.gmra.mrb[0].mxu0 %v385
        %v593 = vpop.f32.mrb[0].mxu0
        %v594 = vadd.f32 0.0, %v593
        %v595 = vpop.f32.mrb[0].mxu0
        %v596 = vpop.f32.mrb[0].mxu0
        %v597 = vadd.f32 0.0, %v596
        %v598 = vpop.f32.mrb[0].mxu0
        %599 = vmatprep.mubr.bf16.mxu0 %v388
        %600 = vmatmul.mubr.bf16.gmra.mrb[0].mxu0 %v387
        %v601 = vpop.f32.mrb[0].mxu0
        %v602 = vadd.f32 0.0, %v601
        %v603 = vpop.f32.mrb[0].mxu0
        %v604 = vpop.f32.mrb[0].mxu0
        %v605 = vadd.f32 0.0, %v604
        %v606 = vpop.f32.mrb[0].mxu0
        %607 = vmatprep.mubr.bf16.mxu0 %v390
        %608 = vmatmul.mubr.bf16.gmra.mrb[0].mxu0 %v389
        %v609 = vpop.f32.mrb[0].mxu0
        %v610 = vadd.f32 0.0, %v609
        %v611 = vpop.f32.mrb[0].mxu0
        %v612 = vpop.f32.mrb[0].mxu0
        %v613 = vadd.f32 0.0, %v612
        %v614 = vpop.f32.mrb[0].mxu0
        %615 = vdwg.mxu0
        %v616 = vld [vmem:[%s4] sm:$0xff]
        %vm617 = vcmask 31744
        %v619 = vsel %vm617, %v616, 0
        %v622 = vsel %vm617, %v554, 0
        %v625 = vsel %vm617, %v557, 0
        %v628 = vsel %vm617, %v562, 0
        %v631 = vsel %vm617, %v565, 0
        %v634 = vsel %vm617, %v570, 0
        %v637 = vsel %vm617, %v573, 0
        %v640 = vsel %vm617, %v578, 0
        %v643 = vsel %vm617, %v581, 0
        %v646 = vsel %vm617, %v586, 0
        %v649 = vsel %vm617, %v589, 0
        %v652 = vsel %vm617, %v594, 0
        %v655 = vsel %vm617, %v597, 0
        %v658 = vsel %vm617, %v602, 0
        %v661 = vsel %vm617, %v605, 0
        %v664 = vsel %vm617, %v610, 0
        %v667 = vsel %vm617, %v613, 0
        %669 = vmatprep.subr.mxu0 0.0
        %670 = vmatpush1.xpose.msra.mxu0 %v622
        %671 = vmatprep.subr.mxu0 0.0
        %672 = vmatpush1.xpose.msra.mxu0 %v625
        %673 = vmatprep.subr.mxu0 0.0
        %674 = vmatpush1.xpose.msra.mxu0 %v628
        %675 = vmatprep.subr.mxu0 0.0
        %676 = vmatpush1.xpose.msra.mxu0 %v631
        %677 = vmatprep.subr.mxu0 0.0
        %678 = vmatpush1.xpose.msra.mxu0 %v634
        %679 = vmatprep.subr.mxu0 0.0
        %680 = vmatpush1.xpose.msra.mxu0 %v637
        %681 = vmatprep.subr.mxu0 0.0
        %682 = vmatpush1.xpose.msra.mxu0 %v640
        %683 = vmatprep.subr.mxu0 0.0
        %684 = vmatpush1.xpose.msra.mxu0 %v643
        %685 = vmatprep.subr.mxu0 0.0
        %686 = vmatpush1.xpose.msra.mxu0 %v646
        %687 = vmatprep.subr.mxu0 0.0
        %688 = vmatpush1.xpose.msra.mxu0 %v649
        %689 = vmatprep.subr.mxu0 0.0
        %690 = vmatpush1.xpose.msra.mxu0 %v652
        %691 = vmatprep.subr.mxu0 0.0
        %692 = vmatpush1.xpose.msra.mxu0 %v655
        %693 = vmatprep.subr.mxu0 0.0
        %694 = vmatpush1.xpose.msra.mxu0 %v658
        %695 = vmatprep.subr.mxu0 0.0
        %696 = vmatpush1.xpose.msra.mxu0 %v661
        %697 = vmatprep.subr.mxu0 0.0
        %698 = vmatpush1.xpose.msra.mxu0 %v664
        %699 = vmatprep.subr.mxu0 0.0
        %700 = vmatpush1.xpose.msra.mxu0 %v667
        %701 = vmatprep.subr.mxu0 0.0
        %702 = vmatpush1.xpose.msra.mxu0 0.0
        %703 = vmatprep.subr.mxu0 0.0
        %704 = vmatpush1.xpose.msra.mxu0 0.0
        %705 = vmatprep.subr.mxu0 0.0
        %706 = vmatpush1.xpose.msra.mxu0 0.0
        %707 = vmatprep.subr.mxu0 0.0
        %708 = vmatpush1.xpose.msra.mxu0 0.0
        %709 = vmatprep.subr.mxu0 0.0
        %710 = vmatpush1.xpose.msra.mxu0 0.0
        %711 = vmatprep.subr.mxu0 0.0
        %712 = vmatpush1.xpose.msra.mxu0 0.0
        %713 = vmatprep.subr.mxu0 0.0
        %714 = vmatpush1.xpose.msra.mxu0 0.0
        %715 = vmatprep.subr.mxu0 0.0
        %716 = vmatpush1.xpose.msra.mxu0 0.0
        %717 = vmatprep.subr.mxu0 0.0
        %718 = vmatpush1.xpose.msra.mxu0 0.0
        %719 = vmatprep.subr.mxu0 0.0
        %720 = vmatpush1.xpose.msra.mxu0 0.0
        %721 = vmatprep.subr.mxu0 0.0
        %722 = vmatpush1.xpose.msra.mxu0 0.0
        %723 = vmatprep.subr.mxu0 0.0
        %724 = vmatpush1.xpose.msra.mxu0 0.0
        %725 = vmatprep.subr.mxu0 0.0
        %726 = vmatpush1.xpose.msra.mxu0 0.0
        %727 = vmatprep.subr.mxu0 0.0
        %728 = vmatpush1.xpose.msra.mxu0 0.0
        %729 = vmatprep.subr.mxu0 0.0
        %730 = vmatpush1.xpose.msra.mxu0 0.0
        %731 = vmatprep.subr.mxu0 0.0
        %732 = vmatpush1.xpose.msra.mxu0 0.0
        %733 = vmatprep.mubr.f32.mxu0 0.0
        %734 = vmatmul.mubr.f32.gmra.mrb[0].mxu0 %v619
        %v735 = vpop.f32.mrb[0].mxu0
        %v736 = vadd.f32 0.0, %v735
        %v737 = vpop.f32.mrb[0].mxu0
        %738 = vdwg.mxu0
        %v739 = vld [vmem:[%s3] sm:$0xff]
        %vm740 = vcmask 64512
        %v742 = vsel %vm740, %v739, 0
        %744 = vmatprep.subr.mxu0 0.0
        %745 = vmatpush1.msra.mxu0 %v342
        %746 = vmatprep.subr.mxu0 0.0
        %747 = vmatpush1.msra.mxu0 0.0
        %748 = vmatprep.subr.mxu0 0.0
        %749 = vmatpush1.msra.mxu0 0.0
        %750 = vmatprep.subr.mxu0 0.0
        %751 = vmatpush1.msra.mxu0 0.0
        %752 = vmatprep.subr.mxu0 0.0
        %753 = vmatpush1.msra.mxu0 0.0
        %754 = vmatprep.subr.mxu0 0.0
        %755 = vmatpush1.msra.mxu0 0.0
        %756 = vmatprep.subr.mxu0 0.0
        %757 = vmatpush1.msra.mxu0 0.0
        %758 = vmatprep.subr.mxu0 0.0
        %759 = vmatpush1.msra.mxu0 0.0
        %760 = vmatprep.subr.mxu0 0.0
        %761 = vmatpush1.msra.mxu0 0.0
        %762 = vmatprep.subr.mxu0 0.0
        %763 = vmatpush1.msra.mxu0 0.0
        %764 = vmatprep.subr.mxu0 0.0
        %765 = vmatpush1.msra.mxu0 0.0
        %766 = vmatprep.subr.mxu0 0.0
        %767 = vmatpush1.msra.mxu0 0.0
        %768 = vmatprep.subr.mxu0 0.0
        %769 = vmatpush1.msra.mxu0 0.0
        %770 = vmatprep.subr.mxu0 0.0
        %771 = vmatpush1.msra.mxu0 0.0
        %772 = vmatprep.subr.mxu0 0.0
        %773 = vmatpush1.msra.mxu0 0.0
        %774 = vmatprep.subr.mxu0 0.0
        %775 = vmatpush1.msra.mxu0 0.0
        %776 = vmatprep.subr.mxu0 0.0
        %777 = vmatpush1.msra.mxu0 0.0
        %778 = vmatprep.subr.mxu0 0.0
        %779 = vmatpush1.msra.mxu0 0.0
        %780 = vmatprep.subr.mxu0 0.0
        %781 = vmatpush1.msra.mxu0 0.0
        %782 = vmatprep.subr.mxu0 0.0
        %783 = vmatpush1.msra.mxu0 0.0
        %784 = vmatprep.subr.mxu0 0.0
        %785 = vmatpush1.msra.mxu0 0.0
        %786 = vmatprep.subr.mxu0 0.0
        %787 = vmatpush1.msra.mxu0 0.0
        %788 = vmatprep.subr.mxu0 0.0
        %789 = vmatpush1.msra.mxu0 0.0
        %790 = vmatprep.subr.mxu0 0.0
        %791 = vmatpush1.msra.mxu0 0.0
        %792 = vmatprep.subr.mxu0 0.0
        %793 = vmatpush1.msra.mxu0 0.0
        %794 = vmatprep.subr.mxu0 0.0
        %795 = vmatpush1.msra.mxu0 0.0
        %796 = vmatprep.subr.mxu0 0.0
        %797 = vmatpush1.msra.mxu0 0.0
        %798 = vmatprep.subr.mxu0 0.0
        %799 = vmatpush1.msra.mxu0 0.0
        %800 = vmatprep.subr.mxu0 0.0
        %801 = vmatpush1.msra.mxu0 0.0
        %802 = vmatprep.subr.mxu0 0.0
        %803 = vmatpush1.msra.mxu0 0.0
        %804 = vmatprep.subr.mxu0 0.0
        %805 = vmatpush1.msra.mxu0 0.0
        %806 = vmatprep.subr.mxu0 0.0
        %807 = vmatpush1.msra.mxu0 0.0
        %808 = vmatprep.mubr.f32.mxu0 0.0
        %809 = vmatmul.mubr.f32.gmra.mrb[0].mxu0 %v742
        %v810 = vpop.f32.mrb[0].mxu0
        %v811 = vadd.f32 %v736, %v810
        %v812 = vpop.f32.mrb[0].mxu0
        %813 = vdwg.mxu0
        %v814 = vld [vmem:[%s5] sm:$0xff]
        %816 = vset.pattern.permute.xlu0 0
        %817 = vperm.xlu0 %816, %v814
        %v818 = vpop.permute.xlu0 %817
        %v820 = vadd.f32 %v811, %v818
        %v821 = vmax.f32 %v820, 0.0
        %v822 = vadd.f32 %v821, %v342
        %823 = vst [vmem:[%s326] sm:$0xff] %v822
        %s824 = sand.u32 %s190, 1
        %s825 = scalar_lea.sflag [#allocation4], %s824
        %s826 = sand.u32 %s190, 1
        %s827 = smul.addr %s826, 8
        %s828 = scalar_lea.vmem [#allocation5], %s827
        // Predicated region
        $region49: #{tpu_custom_call.1} parent=43 // pred_check
          %p829 = pneg %p200
        $region50: #{tpu_custom_call.1} parent=43 // pred_check_branch
          %831 = sbr.rel (%p829) target = $region52
        $region51: #{tpu_custom_call.1} parent=43 // pred_region
          %s833 = ssub.s32 128, 128
          %834 = vsyncadd %s825, %s833
          %s835 = smul.addr %s27, 2
          %s836 = sadd.s32 %s28, %s835
          %s837 = smul.addr %s836, 128
          %s838 = scalar_lea.hbm %s6, %s837
          %s840 = sshll.u32 %s828, 4
          %s841 = int_to_ptr.vmem [resolvable:$true] %s840
          %843 = dma.vmem_to_hbm [thread:$0]  %s841, 128, %s838, %s825
        $region52: #{tpu_custom_call.1} parent=43 // pred_fallthru
          _
      $region44: #{tpu_custom_call.1} parent=5 // pred_fallthru
        _
      %p844 = scmp.le.s32.totalorder 2, %s18
      // Predicated region
      $region53: #{tpu_custom_call.1} parent=5 // pred_check
        %p845 = pneg %p844
      $region54: #{tpu_custom_call.1} parent=5 // pred_check_branch
        %847 = sbr.rel (%p845) target = $region56
      $region55: #{tpu_custom_call.1} parent=5 // pred_region
        %s848 = ssub.s32 %s18, 2
        // Predicated region
        $region57: #{tpu_custom_call.1} parent=55 // pred_check
          %p849 = pneg %p206
        $region58: #{tpu_custom_call.1} parent=55 // pred_check_branch
          %851 = sbr.rel (%p849) target = $region60
        $region59: #{tpu_custom_call.1} parent=55 // pred_region
          %s852 = sand.u32 %s191, 1
          %s853 = scalar_lea.sflag [#allocation4], %s852
          %s854 = sand.u32 %s191, 1
          %s855 = smul.addr %s854, 8
          %s856 = scalar_lea.vmem [#allocation5], %s855
          %857 = dma.done %s853, 128
        $region60: #{tpu_custom_call.1} parent=55 // pred_fallthru
          _
      $region56: #{tpu_custom_call.1} parent=5 // pred_fallthru
        _
    $region6: #{tpu_custom_call.1} parent=1 // loop_footer
      %s22 = sadd.s32 1, %s18
    $region7: #{tpu_custom_call.1} parent=1 // loop_footer_branch
      %17 = sbr.rel target = $region3
    $region8: #{tpu_custom_call.1} parent=1 // loop_exit
      _
    %858 = vsyncpa [#allocation3], 1
    %s859 = scalar_lea.sflag [#allocation3], 1
    %860 = vsyncpa %s859, 1
    %861 = vsyncpa [#allocation4], 1
    %s862 = scalar_lea.sflag [#allocation4], 1
    %863 = vsyncpa %s862, 1

</llo_original>
